<compile_context>
chip_gen: v7x
topology: tpu7x:2x2x1
jax: 0.10.0
libtpu: 0.0.40
codegen_flags: <defaults>
</compile_context>

<pallas_src>
import math
import functools

import numpy as np
import jax
import jax.numpy as jnp
from jax.experimental import pallas as pl
from jax.experimental.pallas import tpu as pltpu


# ----------------------------------------------------------------------------
# marginal_prob_std for the SMLD / VE-SDE (sigma fixed in-script).
# ----------------------------------------------------------------------------
SIGMA = 25.0
LANE = 128


def marginal_prob_std(t, sigma=SIGMA):
    # std(t) = sqrt((sigma^{2t} - 1) / (2 ln sigma))
    return jnp.sqrt((sigma ** (2.0 * t) - 1.0) / (2.0 * jnp.log(sigma)))


def _ru(n, m):
    return ((n + m - 1) // m) * m


# ----------------------------------------------------------------------------
# Pallas kernel: whole MLP forward, weights read from one packed VMEM slab.
# ----------------------------------------------------------------------------
def mlp_kernel(xin_ref, slab_ref, out_ref, *, layout, length, embed_dim,
               hidden_layers, stage_off, stage_w):
    L, E = length, embed_dim

    def wblk(name):
        off, r, c = layout[name]          # static python ints; c multiple of 128
        return slab_ref[off:off + r, 0:c]

    def relu(v):
        return jnp.maximum(v, 0.0)

    def dot(a, b):
        return jnp.dot(a, b, preferred_element_type=jnp.float32)

    # Packed lane-dense input: lanes [0:L] = x, lane L = t, lane L+1 = inv_std.
    xin = xin_ref[...]                                    # (TB, IN_W)
    t = xin[:, L:L + 1]                                   # (TB, 1)
    inv_std = xin[:, L + 1:L + 2]                         # (TB, 1)

    # --- GaussianFourierProjection: [sin | cos] in one lane-dense pass --------
    # "fourier" row holds [Wf | Wf | 0...]; keep the reference's rounding order
    # ((t*Wf)*2*pi, exact power-of-two factor commutes with rounding).
    xp = (t * wblk("fourier")) * (2.0 * math.pi)          # (TB, EW)
    lane = jax.lax.broadcasted_iota(jnp.int32, xp.shape, 1)
    # lanes [0,E/2): sin ; [E/2,E): cos ; padded lanes: sin(0)=0.
    sincos = jnp.where((lane >= E // 2) & (lane < E), jnp.cos(xp), jnp.sin(xp))

    # --- time embedding + ALL emb-only dense layers hoisted up front ----------
    emb_t = relu(dot(sincos, wblk("We")) + wblk("be"))        # (TB, EW)
    ht_all = relu(dot(emb_t, wblk("Wemb")) + wblk("bemb"))    # (TB, AW)
    # Per-stage emb contributions (+ dense biases), 128 lanes per stage.
    contrib = dot(ht_all, wblk("Wbd")) + wblk("ball")         # (TB, CO)

    def cslice(i):                                            # 128-aligned view
        o = stage_off[i]
        return contrib[:, o:o + stage_w[i]]

    # --- sequential h path: one matmul per stage -------------------------------
    h = relu(dot(xin, wblk("Wax")) + cslice(0))               # dense_alpha
    for i in range(hidden_layers):
        h = relu(dot(h, wblk(f"Wd{i}h")) + cslice(i + 1))     # dense_list[i]
    h = dot(h, wblk("Woh")) + cslice(hidden_layers + 1)       # dense_omega

    # --- score = h * (1 / marginal_prob_std(t))  (inv_std from wrapper) --------
    out_ref[...] = h * inv_std


# ----------------------------------------------------------------------------
# Parameter construction (deterministic, mimics nn.Linear uniform init).
# Weights are stored pre-transposed as (in_features, out_features).
# ----------------------------------------------------------------------------
def init_params(key, length, hidden_dim, embed_dim, hidden_layers):
    def linear(k, fan_in, fan_out):
        k1, k2 = jax.random.split(k)
        bound = 1.0 / math.sqrt(fan_in)
        w = jax.random.uniform(k1, (fan_in, fan_out), jnp.float32, -bound, bound)
        b = jax.random.uniform(k2, (1, fan_out), jnp.float32, -bound, bound)
        return w, b

    keys = jax.random.split(key, 8 + 2 * hidden_layers)
    p = {}
    # GaussianFourierProjection weight (frozen): randn(E//2) * 30
    p["Wf"] = jax.random.normal(keys[0], (1, embed_dim // 2), jnp.float32) * 30.0
    p["We"], p["be"] = linear(keys[1], embed_dim, embed_dim)            # embed Linear
    p["Wea"], p["bea"] = linear(keys[2], embed_dim, embed_dim)          # emb_dense_alpha
    p["Wa"], p["ba"] = linear(keys[3], length + embed_dim, hidden_dim)  # dense_alpha
    p["layers"] = []
    for i in range(hidden_layers):
        wemb, bemb = linear(keys[4 + 2 * i], embed_dim, embed_dim)
        wd, bd = linear(keys[5 + 2 * i], hidden_dim + embed_dim, hidden_dim)
        p["layers"].append((wemb, bemb, wd, bd))
    p["Weo"], p["beo"] = linear(keys[4 + 2 * hidden_layers], embed_dim, embed_dim)
    p["Wo"], p["bo"] = linear(keys[5 + 2 * hidden_layers], hidden_dim + embed_dim, length)
    return p


# ----------------------------------------------------------------------------
# Host-side packing of all weights/biases into ONE lane-dense f32 slab.
# Every block is padded to 128-lane multiples (and 128-row K where needed),
# so every in-kernel load/slice is aligned and unmasked.
# ----------------------------------------------------------------------------
def pack_params(p, length, hidden_dim, embed_dim, hidden_layers):
    L, H, E = length, hidden_dim, embed_dim
    n_emb = hidden_layers + 2                      # alpha, hidden..., omega

    IN_W = _ru(L + 2, LANE)                        # packed input lanes
    EW = _ru(E, LANE)                              # fourier / emb_t lanes
    AW = _ru(n_emb * E, LANE)                      # stacked emb outputs lanes
    HW = _ru(H, LANE)                              # hidden h lanes
    OW = _ru(L, LANE)                              # output lanes
    real_w = [H] * (hidden_layers + 1) + [L]
    pad_w = [HW] * (hidden_layers + 1) + [OW]
    stage_off = tuple(int(v) for v in np.concatenate([[0], np.cumsum(pad_w[:-1])]))
    CO = int(sum(pad_w))

    np_p = jax.tree_util.tree_map(np.asarray, p)
    blocks = []

    def add(name, arr):
        blocks.append((name, arr.astype(np.float32)))

    # Fourier: duplicated Wf so a single sin/cos lane-select pass makes [sin|cos].
    fourier = np.zeros((1, EW), np.float32)
    fourier[0, :E] = np.concatenate([np_p["Wf"], np_p["Wf"]], axis=1)[0]
    add("fourier", fourier)

    we = np.zeros((EW, EW), np.float32)
    we[:E, :E] = np_p["We"]
    add("We", we)
    be = np.zeros((1, EW), np.float32)
    be[0, :E] = np_p["be"][0]
    add("be", be)

    # Stack every emb_t-only dense layer into one padded (EW, AW) weight.
    emb_ws = [np_p["Wea"]] + [l[0] for l in np_p["layers"]] + [np_p["Weo"]]
    emb_bs = [np_p["bea"]] + [l[1] for l in np_p["layers"]] + [np_p["beo"]]
    wemb = np.zeros((EW, AW), np.float32)
    bemb = np.zeros((1, AW), np.float32)
    for i, (w, b) in enumerate(zip(emb_ws, emb_bs)):
        wemb[:E, i * E:(i + 1) * E] = w
        bemb[0, i * E:(i + 1) * E] = b[0]
    add("Wemb", wemb)
    add("bemb", bemb)

    # Block-diagonal weight: ht_all -> per-stage emb contributions (+ biases),
    # each stage's output padded to its own 128-lane slot.
    emb_parts = ([np_p["Wa"][L:, :]]
                 + [l[2][H:, :] for l in np_p["layers"]]
                 + [np_p["Wo"][H:, :]])
    bias_parts = [np_p["ba"]] + [l[3] for l in np_p["layers"]] + [np_p["bo"]]
    wbd = np.zeros((AW, CO), np.float32)
    ball = np.zeros((1, CO), np.float32)
    for i, (w, b, rw) in enumerate(zip(emb_parts, bias_parts, real_w)):
        wbd[i * E:(i + 1) * E, stage_off[i]:stage_off[i] + rw] = w
        ball[0, stage_off[i]:stage_off[i] + rw] = b[0]
    add("Wbd", wbd)
    add("ball", ball)

    # Per-stage h-path weights, padded so K matches the 128-lane activations.
    # Rows L and L+1 of Wax (the t / inv_std lanes of the packed input) are 0.
    wax = np.zeros((IN_W, HW), np.float32)
    wax[:L, :H] = np_p["Wa"][:L, :]
    add("Wax", wax)
    for i, l in enumerate(np_p["layers"]):
        wd = np.zeros((HW, HW), np.float32)
        wd[:H, :H] = l[2][:H, :]
        add(f"Wd{i}h", wd)
    woh = np.zeros((HW, OW), np.float32)
    woh[:H, :L] = np_p["Wo"][:H, :]
    add("Woh", woh)

    # Pack: rows padded to multiples of 8, common lane width (multiple of 128).
    slab_cols = _ru(max(b.shape[1] for _, b in blocks), LANE)
    layout, rows, off = {}, [], 0
    for name, arr in blocks:
        r, c = arr.shape
        rp = _ru(r, 8)
        buf = np.zeros((rp, slab_cols), np.float32)
        buf[:r, :c] = arr
        layout[name] = (off, r, c)
        rows.append(buf)
        off += rp
    slab = jnp.asarray(np.concatenate(rows, axis=0))

    meta = dict(IN_W=IN_W, EW=EW, AW=AW, HW=HW, OW=OW, CO=CO,
                stage_off=stage_off, stage_w=tuple(pad_w))
    return slab, layout, meta


# ----------------------------------------------------------------------------
# Wrapper calling pallas_call.
# ----------------------------------------------------------------------------
def mlp_forward(x, t, slab, layout, meta, length, hidden_dim, embed_dim,
                hidden_layers):
    B, L = x.shape
    assert L == length
    IN_W, OW = meta["IN_W"], meta["OW"]
    assert L + 2 <= IN_W

    t32 = t.astype(jnp.float32)
    inv_std = 1.0 / marginal_prob_std(t32)      # folded into wrapper (free in XLA)

    # Batch tile: whole (8-padded) batch when small; else fixed 256-row tiles
    # with a zero-padded ragged tail (padded rows are discarded below).
    if B <= 512:
        tb = _ru(B, 8)
    else:
        tb = 256
    B_pad = _ru(B, tb)

    # One lane-dense packed input: [x | t | inv_std | zeros].
    xin = jnp.zeros((B_pad, IN_W), jnp.float32)
    xin = xin.at[:B, :L].set(x.astype(jnp.float32))
    xin = xin.at[:B, L].set(t32)
    xin = xin.at[:B, L + 1].set(inv_std)

    EW, AW, HW, CO = meta["EW"], meta["AW"], meta["HW"], meta["CO"]
    flops = 2 * B_pad * (EW * EW + EW * AW + AW * CO + IN_W * HW
                         + hidden_layers * HW * HW + HW * OW)
    bytes_accessed = 4 * (B_pad * IN_W + int(slab.size) + B_pad * OW)
    cost = pl.CostEstimate(flops=int(flops), transcendentals=int(2 * B_pad * EW),
                           bytes_accessed=int(bytes_accessed))

    kernel = functools.partial(
        mlp_kernel, layout=layout, length=L, embed_dim=embed_dim,
        hidden_layers=hidden_layers, stage_off=meta["stage_off"],
        stage_w=meta["stage_w"])

    out = pl.pallas_call(
        kernel,
        out_shape=jax.ShapeDtypeStruct((B_pad, OW), jnp.float32),
        grid=(B_pad // tb,),
        in_specs=[
            pl.BlockSpec((tb, IN_W), lambda i: (i, 0)),     # packed [x|t|inv_std]
            pl.BlockSpec(slab.shape, lambda i: (0, 0)),     # resident weight slab
        ],
        out_specs=pl.BlockSpec((tb, OW), lambda i: (i, 0)), # lane-dense output
        compiler_params=pltpu.CompilerParams(dimension_semantics=("parallel",)),
        cost_estimate=cost,
    )(xin, slab)
    return out[:B, :L]


# ----------------------------------------------------------------------------
# Pure-JAX reference (mirrors the PyTorch forward exactly) for verification.
# ----------------------------------------------------------------------------
def mlp_ref(x, t, p, hidden_layers):
    x_proj = t[:, None] * p["Wf"] * 2.0 * np.pi
    emb0 = jnp.concatenate([jnp.sin(x_proj), jnp.cos(x_proj)], axis=-1)
    emb_t = jax.nn.relu(emb0 @ p["We"] + p["be"])
    ht = jax.nn.relu(emb_t @ p["Wea"] + p["bea"])
    h = jax.nn.relu(jnp.concatenate([x, ht], axis=1) @ p["Wa"] + p["ba"])
    for (wemb, bemb, wd, bd) in p["layers"]:
        ht = jax.nn.relu(emb_t @ wemb + bemb)
        h = jax.nn.relu(jnp.concatenate([h, ht], axis=1) @ wd + bd)
    ht = jax.nn.relu(emb_t @ p["Weo"] + p["beo"])
    h = jnp.concatenate([h, ht], axis=1) @ p["Wo"] + p["bo"]
    return h / marginal_prob_std(t)[:, None]


if __name__ == "__main__":
    # Small, forward-consistent shapes.
    B, LENGTH, HIDDEN, EMBED, N_LAYERS = 8, 16, 32, 16, 2

    key = jax.random.PRNGKey(0)
    kx, kt, kp = jax.random.split(key, 3)
    x = jax.random.normal(kx, (B, LENGTH), jnp.float32)
    t = jax.random.uniform(kt, (B,), jnp.float32, 0.01, 1.0)

    params = init_params(kp, LENGTH, HIDDEN, EMBED, N_LAYERS)
    slab, layout, meta = pack_params(params, LENGTH, HIDDEN, EMBED, N_LAYERS)

    out = mlp_forward(x, t, slab, layout, meta, LENGTH, HIDDEN, EMBED, N_LAYERS)
    out = jax.block_until_ready(out)

    ref = mlp_ref(x, t, params, N_LAYERS)
    np.testing.assert_allclose(np.asarray(out), np.asarray(ref), rtol=1e-4, atol=1e-4)

    print("KERNEL_OK")
</pallas_src>

<mosaic_0001>
module attributes {stable_mosaic.version = 11 : i64} {
  func.func @mlp_kernel(%arg0: i32, %arg1: memref<8x128xf32, #tpu.memory_space<vmem>>, %arg2: memref<928x512xf32, #tpu.memory_space<vmem>>, %arg3: memref<8x128xf32, #tpu.memory_space<vmem>>) attributes {dimension_semantics = [#tpu.dimension_semantics<parallel>], iteration_bounds = array<i64: 1>, scalar_prefetch = 0 : i64, scratch_operands = 0 : i64, tpu.core_type = #tpu.core_type<tc>, window_params = [{transform_indices = @transform_0, window_bounds = array<i64: 8, 128>}, {pipeline_mode = #tpu.pipeline_mode<synchronous>, transform_indices = @transform_1, window_bounds = array<i64: 928, 512>}, {transform_indices = @transform_2, window_bounds = array<i64: 8, 128>}]} {
    %c0 = arith.constant 0 : index
    %c0_0 = arith.constant 0 : index
    %0 = vector.load %arg1[%c0, %c0_0] : memref<8x128xf32, #tpu.memory_space<vmem>>, vector<8x128xf32>
    %1 = vector.extract_strided_slice %0 {offsets = [0, 16], sizes = [8, 1], strides = [1, 1]} : vector<8x128xf32> to vector<8x1xf32>
    %2 = vector.extract_strided_slice %0 {offsets = [0, 17], sizes = [8, 1], strides = [1, 1]} : vector<8x128xf32> to vector<8x1xf32>
    %c0_1 = arith.constant 0 : index
    %c0_2 = arith.constant 0 : index
    %3 = vector.load %arg2[%c0_1, %c0_2] : memref<928x512xf32, #tpu.memory_space<vmem>>, vector<1x128xf32>
    %4 = vector.broadcast %1 : vector<8x1xf32> to vector<8x128xf32>
    %5 = vector.broadcast %3 : vector<1x128xf32> to vector<8x128xf32>
    %6 = arith.mulf %4, %5 : vector<8x128xf32>
    %cst = arith.constant 6.28318548 : f32
    %7 = vector.broadcast %cst : f32 to vector<8x128xf32>
    %8 = arith.mulf %6, %7 : vector<8x128xf32>
    %9 = tpu.iota {dimensions = array<i32: 1>} : vector<8x128xi32>
    %c8_i32 = arith.constant 8 : i32
    %10 = vector.broadcast %c8_i32 : i32 to vector<8x128xi32>
    %11 = arith.cmpi sge, %9, %10 : vector<8x128xi32>
    %c16_i32 = arith.constant 16 : i32
    %12 = vector.broadcast %c16_i32 : i32 to vector<8x128xi32>
    %13 = arith.cmpi slt, %9, %12 : vector<8x128xi32>
    %14 = arith.andi %11, %13 : vector<8x128xi1>
    %15 = math.cos %8 : vector<8x128xf32>
    %16 = math.sin %8 : vector<8x128xf32>
    %17 = arith.select %14, %15, %16 : vector<8x128xi1>, vector<8x128xf32>
    %c8 = arith.constant 8 : index
    %c0_3 = arith.constant 0 : index
    %18 = vector.load %arg2[%c8, %c0_3] : memref<928x512xf32, #tpu.memory_space<vmem>>, vector<128x128xf32>
    %cst_4 = arith.constant dense<0.000000e+00> : vector<8x128xf32>
    %19 = tpu.matmul %17, %18, %cst_4 {dimension_numbers = #tpu.dot_dimension_numbers<[1], [0], [0], [1], [0, 0, 1, 1], [], []>} : vector<8x128xf32>, vector<128x128xf32>, vector<8x128xf32> -> vector<8x128xf32>
    %c136 = arith.constant 136 : index
    %c0_5 = arith.constant 0 : index
    %20 = vector.load %arg2[%c136, %c0_5] : memref<928x512xf32, #tpu.memory_space<vmem>>, vector<1x128xf32>
    %21 = vector.broadcast %20 : vector<1x128xf32> to vector<8x128xf32>
    %22 = arith.addf %19, %21 : vector<8x128xf32>
    %cst_6 = arith.constant 0.000000e+00 : f32
    %23 = vector.broadcast %cst_6 : f32 to vector<8x128xf32>
    %24 = arith.maximumf %22, %23 : vector<8x128xf32>
    %c144 = arith.constant 144 : index
    %c0_7 = arith.constant 0 : index
    %25 = vector.load %arg2[%c144, %c0_7] : memref<928x512xf32, #tpu.memory_space<vmem>>, vector<128x128xf32>
    %cst_8 = arith.constant dense<0.000000e+00> : vector<8x128xf32>
    %26 = tpu.matmul %24, %25, %cst_8 {dimension_numbers = #tpu.dot_dimension_numbers<[1], [0], [0], [1], [0, 0, 1, 1], [], []>} : vector<8x128xf32>, vector<128x128xf32>, vector<8x128xf32> -> vector<8x128xf32>
    %c272 = arith.constant 272 : index
    %c0_9 = arith.constant 0 : index
    %27 = vector.load %arg2[%c272, %c0_9] : memref<928x512xf32, #tpu.memory_space<vmem>>, vector<1x128xf32>
    %28 = vector.broadcast %27 : vector<1x128xf32> to vector<8x128xf32>
    %29 = arith.addf %26, %28 : vector<8x128xf32>
    %cst_10 = arith.constant 0.000000e+00 : f32
    %30 = vector.broadcast %cst_10 : f32 to vector<8x128xf32>
    %31 = arith.maximumf %29, %30 : vector<8x128xf32>
    %c280 = arith.constant 280 : index
    %c0_11 = arith.constant 0 : index
    %32 = vector.load %arg2[%c280, %c0_11] : memref<928x512xf32, #tpu.memory_space<vmem>>, vector<128x512xf32>
    %cst_12 = arith.constant dense<0.000000e+00> : vector<8x512xf32>
    %33 = tpu.matmul %31, %32, %cst_12 {dimension_numbers = #tpu.dot_dimension_numbers<[1], [0], [0], [1], [0, 0, 1, 1], [], []>} : vector<8x128xf32>, vector<128x512xf32>, vector<8x512xf32> -> vector<8x512xf32>
    %c408 = arith.constant 408 : index
    %c0_13 = arith.constant 0 : index
    %34 = vector.load %arg2[%c408, %c0_13] : memref<928x512xf32, #tpu.memory_space<vmem>>, vector<1x512xf32>
    %35 = vector.broadcast %34 : vector<1x512xf32> to vector<8x512xf32>
    %36 = arith.addf %33, %35 : vector<8x512xf32>
    %c416 = arith.constant 416 : index
    %c0_14 = arith.constant 0 : index
    %37 = vector.load %arg2[%c416, %c0_14] : memref<928x512xf32, #tpu.memory_space<vmem>>, vector<128x128xf32>
    %cst_15 = arith.constant dense<0.000000e+00> : vector<8x128xf32>
    %38 = tpu.matmul %0, %37, %cst_15 {dimension_numbers = #tpu.dot_dimension_numbers<[1], [0], [0], [1], [0, 0, 1, 1], [], []>} : vector<8x128xf32>, vector<128x128xf32>, vector<8x128xf32> -> vector<8x128xf32>
    %39 = vector.extract_strided_slice %36 {offsets = [0, 0], sizes = [8, 128], strides = [1, 1]} : vector<8x512xf32> to vector<8x128xf32>
    %40 = arith.addf %38, %39 : vector<8x128xf32>
    %cst_16 = arith.constant 0.000000e+00 : f32
    %41 = vector.broadcast %cst_16 : f32 to vector<8x128xf32>
    %42 = arith.maximumf %40, %41 : vector<8x128xf32>
    %c544 = arith.constant 544 : index
    %c0_17 = arith.constant 0 : index
    %43 = vector.load %arg2[%c544, %c0_17] : memref<928x512xf32, #tpu.memory_space<vmem>>, vector<128x128xf32>
    %cst_18 = arith.constant dense<0.000000e+00> : vector<8x128xf32>
    %44 = tpu.matmul %42, %43, %cst_18 {dimension_numbers = #tpu.dot_dimension_numbers<[1], [0], [0], [1], [0, 0, 1, 1], [], []>} : vector<8x128xf32>, vector<128x128xf32>, vector<8x128xf32> -> vector<8x128xf32>
    %45 = vector.extract_strided_slice %36 {offsets = [0, 128], sizes = [8, 128], strides = [1, 1]} : vector<8x512xf32> to vector<8x128xf32>
    %46 = arith.addf %44, %45 : vector<8x128xf32>
    %cst_19 = arith.constant 0.000000e+00 : f32
    %47 = vector.broadcast %cst_19 : f32 to vector<8x128xf32>
    %48 = arith.maximumf %46, %47 : vector<8x128xf32>
    %c672 = arith.constant 672 : index
    %c0_20 = arith.constant 0 : index
    %49 = vector.load %arg2[%c672, %c0_20] : memref<928x512xf32, #tpu.memory_space<vmem>>, vector<128x128xf32>
    %cst_21 = arith.constant dense<0.000000e+00> : vector<8x128xf32>
    %50 = tpu.matmul %48, %49, %cst_21 {dimension_numbers = #tpu.dot_dimension_numbers<[1], [0], [0], [1], [0, 0, 1, 1], [], []>} : vector<8x128xf32>, vector<128x128xf32>, vector<8x128xf32> -> vector<8x128xf32>
    %51 = vector.extract_strided_slice %36 {offsets = [0, 256], sizes = [8, 128], strides = [1, 1]} : vector<8x512xf32> to vector<8x128xf32>
    %52 = arith.addf %50, %51 : vector<8x128xf32>
    %cst_22 = arith.constant 0.000000e+00 : f32
    %53 = vector.broadcast %cst_22 : f32 to vector<8x128xf32>
    %54 = arith.maximumf %52, %53 : vector<8x128xf32>
    %c800 = arith.constant 800 : index
    %c0_23 = arith.constant 0 : index
    %55 = vector.load %arg2[%c800, %c0_23] : memref<928x512xf32, #tpu.memory_space<vmem>>, vector<128x128xf32>
    %cst_24 = arith.constant dense<0.000000e+00> : vector<8x128xf32>
    %56 = tpu.matmul %54, %55, %cst_24 {dimension_numbers = #tpu.dot_dimension_numbers<[1], [0], [0], [1], [0, 0, 1, 1], [], []>} : vector<8x128xf32>, vector<128x128xf32>, vector<8x128xf32> -> vector<8x128xf32>
    %57 = vector.extract_strided_slice %36 {offsets = [0, 384], sizes = [8, 128], strides = [1, 1]} : vector<8x512xf32> to vector<8x128xf32>
    %58 = arith.addf %56, %57 : vector<8x128xf32>
    %59 = vector.broadcast %2 : vector<8x1xf32> to vector<8x128xf32>
    %60 = arith.mulf %58, %59 : vector<8x128xf32>
    %c0_25 = arith.constant 0 : index
    %c0_26 = arith.constant 0 : index
    %61 = vector.load %arg3[%c0_25, %c0_26] : memref<8x128xf32, #tpu.memory_space<vmem>>, vector<8x128xf32>
    tpu.vector_store %arg3[%c0_25, %c0_26], %60 {strides = array<i32>} : memref<8x128xf32, #tpu.memory_space<vmem>>, vector<8x128xf32>,
    return
  }
  func.func @transform_0(%arg0: i32) -> (i32, i32) {
    %c0_i32 = arith.constant 0 : i32
    %c0_i32_0 = arith.constant 0 : i32
    return %arg0, %c0_i32 : i32, i32
  }
  func.func @transform_1(%arg0: i32) -> (i32, i32) {
    %c0_i32 = arith.constant 0 : i32
    %c0_i32_0 = arith.constant 0 : i32
    %c0_i32_1 = arith.constant 0 : i32
    return %c0_i32, %c0_i32_0 : i32, i32
  }
  func.func @transform_2(%arg0: i32) -> (i32, i32) {
    %c0_i32 = arith.constant 0 : i32
    %c0_i32_0 = arith.constant 0 : i32
    return %arg0, %c0_i32 : i32, i32
  }
}

</mosaic_0001>

<llo_original>
// kernel: tpu_custom_call.1
$region0: #{tpu_custom_call.1}
  #allocation0 [shape = 'u32[]', space=smem, size = 0x4, offset = 0x4, fixed_abs, tag = 'smem constant byte address 0x4 - core index']
  #allocation1 [shape = 'u32[144,128]{1,0:T(1,128)}', space=vmem, size = 0x12000, scoped, tag = 'internal scratch']
  %s0 = inlined_call_operand.hbm [shape: f32[8,128], index: 0, kind: input, shape index: {}]
  %s1 = inlined_call_operand.hbm [shape: f32[928,512], index: 1, kind: input, shape index: {}]
  %s2 = inlined_call_operand.hbm [shape: f32[8,128], index: 2, kind: output, shape index: {}]
  %s3 = sld [smem:[#allocation0]]
  $region26: #{tpu_custom_call.1} parent=0
    _
  %s5 = ssub.s32 1, %s3
  %s6 = scalar_select 0, %s5, %s3
  $region1: #{tpu_custom_call.1} parent=0
    #allocation2 [shape = 'u8[4096]{0}', space=vmem, size = 0x1000, scoped, tag = 'input window, operand 0, single buffered']
    #allocation3 [shape = 's32[1]{0}', space=sflag, size = 0x4, scoped, tag = 'scoped memory for tpu_custom_call.1']
    #allocation4 [shape = 's32[1]{0}', space=sflag, size = 0x4, scoped, tag = 'scoped memory for tpu_custom_call.1']
    #allocation5 [shape = 'u8[1900544]{0}', space=vmem, size = 0x1d0000, scoped, tag = 'input window, operand 1, single buffered']
    #allocation6 [shape = 's32[1]{0}', space=sflag, size = 0x4, scoped, tag = 'scoped memory for tpu_custom_call.1']
    #allocation7 [shape = 'u8[4096]{0}', space=vmem, size = 0x1000, scoped, tag = 'output window, operand 0, single buffered']
    %7 = vsyncpa [#allocation3], 0
    %8 = vsyncpa [#allocation6], 0
    %9 = vsyncpa [#allocation4], 0
    // Predicated region
    $region2: #{tpu_custom_call.1} parent=1 // pred_check
      _
    $region3: #{tpu_custom_call.1} parent=1 // pred_check_branch
      %11 = sbr.rel (0) target = $region5
    $region4: #{tpu_custom_call.1} parent=1 // pred_region
      %s13 = ssub.s32 128, 128
      %14 = vsyncadd [#allocation3], %s13
      %s16 = sshll.u32 [#allocation2], 4
      %s17 = int_to_ptr.vmem [resolvable:$true] %s16
      %19 = dma.hbm_to_vmem [thread:$0]  %s0, 128, %s17, [#allocation3]
    $region5: #{tpu_custom_call.1} parent=1 // pred_fallthru
      _
    // Predicated region
    $region6: #{tpu_custom_call.1} parent=1 // pred_check
      _
    $region7: #{tpu_custom_call.1} parent=1 // pred_check_branch
      %21 = sbr.rel (0) target = $region9
    $region8: #{tpu_custom_call.1} parent=1 // pred_region
      %s23 = ssub.s32 59392, 59392
      %24 = vsyncadd [#allocation6], %s23
      %s25 = sshll.u32 [#allocation5], 4
      %s26 = int_to_ptr.vmem [resolvable:$true] %s25
      %31 = dma.hbm_to_vmem [thread:$0]  %s1, 59392, %s26, [#allocation6], 512, 512, 32
    $region9: #{tpu_custom_call.1} parent=1 // pred_fallthru
      _
    // Predicated region
    $region10: #{tpu_custom_call.1} parent=1 // pred_check
      _
    $region11: #{tpu_custom_call.1} parent=1 // pred_check_branch
      %33 = sbr.rel (0) target = $region13
    $region12: #{tpu_custom_call.1} parent=1 // pred_region
      %34 = dma.done [#allocation3], 128
    $region13: #{tpu_custom_call.1} parent=1 // pred_fallthru
      _
    // Predicated region
    $region14: #{tpu_custom_call.1} parent=1 // pred_check
      _
    $region15: #{tpu_custom_call.1} parent=1 // pred_check_branch
      %36 = sbr.rel (0) target = $region17
    $region16: #{tpu_custom_call.1} parent=1 // pred_region
      %37 = dma.done [#allocation6], 59392
    $region17: #{tpu_custom_call.1} parent=1 // pred_fallthru
      _
    %v38 = vld [vmem:[#allocation2] sm:$0xff]
    %v39 = vld [vmem:[#allocation5] ss:$0 sm:$0xff]
    %41 = vset.pattern.permute.xlu0 16
    %42 = vperm.xlu0 %41, %v38
    %v43 = vpop.permute.xlu0 %42
    %v45 = vmul.f32 %v43, %v39
    %v46 = vmul.f32 %v45, 6.2831855
    %v47 = vlaneseq
    %v48 = vand.u32 %v47, 127
    %vm49 = vcmp.ge.s32.totalorder %v48, 8
    %vm50 = vcmp.lt.s32.totalorder %v48, 16
    %vm51 = vmand %vm49, %vm50
    %v52 = vand.u32 2147483647, %v46
    %vm53 = vcmp.le.f32.partialorder %v52, 0.7853982
    %vm54 = vcmp.lt.s32.totalorder %v46, 0
    %v55 = vand.u32 %v46, 2139095040
    %v56 = vshrl.u32 %v55, 23
    %v57 = vsub.s32 %v56, 127
    %v58 = vand.u32 2147483647, %v46
    %v59 = vand.u32 %v58, 8388607
    %v60 = vor.u32 %v59, 8388608
    %v61 = vsub.s32 0, %v60
    %v62 = vadd.s32 %v57, 1
    %vm63 = vcmp.gt.s32.totalorder %v62, 0
    %v64 = vsel %vm63, %v62, 0
    %v65 = vshrl.u32 %v64, 5
    %v66 = vand.u32 %v64, 31
    %v67 = vsub.s32 32, %v66
    %v68 = vshrl.u32 683565275, %v67
    %v69 = vshll.u32 683565275, %v66
    %v70 = vshrl.u32 2475754826, %v67
    %v71 = vor.u32 %v69, %v70
    %v72 = vshll.u32 2475754826, %v66
    %v73 = vshrl.u32 2131351028, %v67
    %v74 = vor.u32 %v72, %v73
    %v75 = vshll.u32 2131351028, %v66
    %v76 = vshrl.u32 2102212464, %v67
    %v77 = vor.u32 %v75, %v76
    %v78 = vshll.u32 2102212464, %v66
    %v79 = vshrl.u32 920167782, %v67
    %v80 = vor.u32 %v78, %v79
    %v81 = vshll.u32 920167782, %v66
    %v82 = vshrl.u32 1326507024, %v67
    %v83 = vor.u32 %v81, %v82
    %vm84 = vcmp.lt.s32.totalorder %v65, 1
    %vm85 = vcmp.lt.s32.totalorder %v65, 2
    %vm86 = vcmp.lt.s32.totalorder %v65, 3
    %vm87 = vcmp.lt.s32.totalorder %v65, 4
    %v88 = vsel %vm84, %v68, %v71
    %v89 = vsel %vm87, %v77, 2102212464
    %v90 = vsel %vm86, %v74, %v89
    %v91 = vsel %vm85, %v88, %v90
    %v92 = vsel %vm84, %v71, %v74
    %v93 = vsel %vm87, %v80, 920167782
    %v94 = vsel %vm86, %v77, %v93
    %v95 = vsel %vm85, %v92, %v94
    %v96 = vsel %vm84, %v74, %v77
    %v97 = vsel %vm87, %v83, 1326507024
    %v98 = vsel %vm86, %v80, %v97
    %v99 = vsel %vm85, %v96, %v98
    %v100 = vshll.u32 %v60, 8
    %v101 = vmul.u32.u64.compose %v100, %v99
    %v102 = vextract.low.u32 %v101
    %v103 = vextract.high.u32 %v101
    %v104 = vmul.u32.u64.compose %v100, %v95
    %v105 = vextract.low.u32 %v104
    %v106 = vextract.high.u32 %v104
    %v107 = vmul.u32 %v100, %v91
    %v108 = vadd.s32 %v103, %v105
    %vm109 = vc.u32 %v103, %v105
    %v110 = vadd.s32 %v106, 1
    %v111 = vsel %vm109, %v110, %v106
    %v112 = vadd.s32 %v107, %v111
    %v113 = vadd.s32 %v112, 536870912
    %v114 = vshrl.u32 %v113, 30
    %v115 = vshll.u32 %v114, 30
    %v116 = vsub.s32 %v112, %v115
    %vm117 = vcmp.lt.s32.totalorder %v116, 0
    %v118 = vsub.s32 0, %v116
    %v119 = vsel %vm117, %v118, %v116
    %v120 = vclz %v119
    %v121 = vsub.s32 %v120, 2
    %vm122 = vcmp.gt.s32.totalorder 0, %v121
    %v123 = vsel %vm122, 0, %v121
    %v124 = vsub.s32 32, %v123
    %v125 = vshll.u32 %v116, %v123
    %v126 = vshrl.u32 %v108, %v124
    %v127 = vor.u32 %v125, %v126
    %v128 = vsub.s32 4294967266, %v123
    %v129 = vadd.s32 %v128, 127
    %v130 = vshll.u32 %v129, 23
    %v131 = vor.u32 4788187, %v130
    %v132 = vand.u32 2147483647, %v131
    %v134 = vcvt.s32.f32 %v127
    %v135 = vmul.f32 %v134, %v132
    %v136 = vxor.u32 %v135, 2147483648
    %v137 = vsel %vm54, %v136, %v135
    %v138 = vsub.s32 4, %v114
    %v139 = vsel %vm54, %v138, %v114
    %v140 = vsel %vm53, %v46, %v137
    %v141 = vsel %vm53, 0, %v139
    %v142 = vcosq.f32.pop %v140
    %v143 = vsinq.f32.pop %v140
    %vm144 = vweird.f32 %v46
    %v145 = vand.u32 %v141, 3
    %vm146 = vcmp.lt.s32.totalorder %v145, 2
    %vm147 = vcmp.eq.s32.totalorder %v145, 0
    %v148 = vxor.u32 %v143, 2147483648
    %v149 = vsel %vm147, %v142, %v148
    %vm150 = vcmp.eq.s32.totalorder %v145, 2
    %v151 = vxor.u32 %v142, 2147483648
    %v152 = vsel %vm150, %v151, %v143
    %v153 = vsel %vm146, %v149, %v152
    %v154 = vsel %vm144, nan, %v153
    %v155 = vand.u32 2147483647, %v46
    %vm156 = vcmp.le.f32.partialorder %v155, 0.7853982
    %vm157 = vcmp.lt.s32.totalorder %v46, 0
    %v158 = vand.u32 %v46, 2139095040
    %v159 = vshrl.u32 %v158, 23
    %v160 = vsub.s32 %v159, 127
    %v161 = vand.u32 2147483647, %v46
    %v162 = vand.u32 %v161, 8388607
    %v163 = vor.u32 %v162, 8388608
    %v164 = vsub.s32 0, %v163
    %v165 = vadd.s32 %v160, 1
    %vm166 = vcmp.gt.s32.totalorder %v165, 0
    %v167 = vsel %vm166, %v165, 0
    %v168 = vshrl.u32 %v167, 5
    %v169 = vand.u32 %v167, 31
    %v170 = vsub.s32 32, %v169
    %v171 = vshrl.u32 683565275, %v170
    %v172 = vshll.u32 683565275, %v169
    %v173 = vshrl.u32 2475754826, %v170
    %v174 = vor.u32 %v172, %v173
    %v175 = vshll.u32 2475754826, %v169
    %v176 = vshrl.u32 2131351028, %v170
    %v177 = vor.u32 %v175, %v176
    %v178 = vshll.u32 2131351028, %v169
    %v179 = vshrl.u32 2102212464, %v170
    %v180 = vor.u32 %v178, %v179
    %v181 = vshll.u32 2102212464, %v169
    %v182 = vshrl.u32 920167782, %v170
    %v183 = vor.u32 %v181, %v182
    %v184 = vshll.u32 920167782, %v169
    %v185 = vshrl.u32 1326507024, %v170
    %v186 = vor.u32 %v184, %v185
    %vm187 = vcmp.lt.s32.totalorder %v168, 1
    %vm188 = vcmp.lt.s32.totalorder %v168, 2
    %vm189 = vcmp.lt.s32.totalorder %v168, 3
    %vm190 = vcmp.lt.s32.totalorder %v168, 4
    %v191 = vsel %vm187, %v171, %v174
    %v192 = vsel %vm190, %v180, 2102212464
    %v193 = vsel %vm189, %v177, %v192
    %v194 = vsel %vm188, %v191, %v193
    %v195 = vsel %vm187, %v174, %v177
    %v196 = vsel %vm190, %v183, 920167782
    %v197 = vsel %vm189, %v180, %v196
    %v198 = vsel %vm188, %v195, %v197
    %v199 = vsel %vm187, %v177, %v180
    %v200 = vsel %vm190, %v186, 1326507024
    %v201 = vsel %vm189, %v183, %v200
    %v202 = vsel %vm188, %v199, %v201
    %v203 = vshll.u32 %v163, 8
    %v204 = vmul.u32.u64.compose %v203, %v202
    %v205 = vextract.low.u32 %v204
    %v206 = vextract.high.u32 %v204
    %v207 = vmul.u32.u64.compose %v203, %v198
    %v208 = vextract.low.u32 %v207
    %v209 = vextract.high.u32 %v207
    %v210 = vmul.u32 %v203, %v194
    %v211 = vadd.s32 %v206, %v208
    %vm212 = vc.u32 %v206, %v208
    %v213 = vadd.s32 %v209, 1
    %v214 = vsel %vm212, %v213, %v209
    %v215 = vadd.s32 %v210, %v214
    %v216 = vadd.s32 %v215, 536870912
    %v217 = vshrl.u32 %v216, 30
    %v218 = vshll.u32 %v217, 30
    %v219 = vsub.s32 %v215, %v218
    %vm220 = vcmp.lt.s32.totalorder %v219, 0
    %v221 = vsub.s32 0, %v219
    %v222 = vsel %vm220, %v221, %v219
    %v223 = vclz %v222
    %v224 = vsub.s32 %v223, 2
    %vm225 = vcmp.gt.s32.totalorder 0, %v224
    %v226 = vsel %vm225, 0, %v224
    %v227 = vsub.s32 32, %v226
    %v228 = vshll.u32 %v219, %v226
    %v229 = vshrl.u32 %v211, %v227
    %v230 = vor.u32 %v228, %v229
    %v231 = vsub.s32 4294967266, %v226
    %v232 = vadd.s32 %v231, 127
    %v233 = vshll.u32 %v232, 23
    %v234 = vor.u32 4788187, %v233
    %v235 = vand.u32 2147483647, %v234
    %v237 = vcvt.s32.f32 %v230
    %v238 = vmul.f32 %v237, %v235
    %v239 = vxor.u32 %v238, 2147483648
    %v240 = vsel %vm157, %v239, %v238
    %v241 = vsub.s32 4, %v217
    %v242 = vsel %vm157, %v241, %v217
    %v243 = vsel %vm156, %v46, %v240
    %v244 = vsel %vm156, 0, %v242
    %v245 = vcosq.f32.pop %v243
    %v246 = vsinq.f32.pop %v243
    %vm247 = vweird.f32 %v46
    %v248 = vadd.s32 %v244, 3
    %v249 = vand.u32 %v248, 3
    %vm250 = vcmp.lt.s32.totalorder %v249, 2
    %vm251 = vcmp.eq.s32.totalorder %v249, 0
    %v252 = vxor.u32 %v246, 2147483648
    %v253 = vsel %vm251, %v245, %v252
    %vm254 = vcmp.eq.s32.totalorder %v249, 2
    %v255 = vxor.u32 %v245, 2147483648
    %v256 = vsel %vm254, %v255, %v246
    %v257 = vsel %vm250, %v253, %v256
    %v258 = vsel %vm247, nan, %v257
    %v259 = vsel %vm51, %v154, %v258
    %v260 = vld [vmem:[#allocation5 + $0x20] sm:$0xff]
    %v261 = vld [vmem:[#allocation5 + $0x40] sm:$0xff]
    %v262 = vld [vmem:[#allocation5 + $0x60] sm:$0xff]
    %v263 = vld [vmem:[#allocation5 + $0x80] sm:$0xff]
    %v264 = vld [vmem:[#allocation5 + $0xa0] sm:$0xff]
    %v265 = vld [vmem:[#allocation5 + $0xc0] sm:$0xff]
    %v266 = vld [vmem:[#allocation5 + $0xe0] sm:$0xff]
    %v267 = vld [vmem:[#allocation5 + $0x100] sm:$0xff]
    %v268 = vld [vmem:[#allocation5 + $0x120] sm:$0xff]
    %v269 = vld [vmem:[#allocation5 + $0x140] sm:$0xff]
    %v270 = vld [vmem:[#allocation5 + $0x160] sm:$0xff]
    %v271 = vld [vmem:[#allocation5 + $0x180] sm:$0xff]
    %v272 = vld [vmem:[#allocation5 + $0x1a0] sm:$0xff]
    %v273 = vld [vmem:[#allocation5 + $0x1c0] sm:$0xff]
    %v274 = vld [vmem:[#allocation5 + $0x1e0] sm:$0xff]
    %v275 = vld [vmem:[#allocation5 + $0x200] sm:$0xff]
    %v276 = vld [vmem:[#allocation5 + $0x220] ss:$0 sm:$0xff]
    %277 = vmatprep.subr.mxu0 0.0
    %278 = vmatpush1.msra.mxu0 %v260
    %279 = vmatprep.subr.mxu0 0.0
    %280 = vmatpush1.msra.mxu0 %v261
    %281 = vmatprep.subr.mxu0 0.0
    %282 = vmatpush1.msra.mxu0 %v262
    %283 = vmatprep.subr.mxu0 0.0
    %284 = vmatpush1.msra.mxu0 %v263
    %285 = vmatprep.subr.mxu0 0.0
    %286 = vmatpush1.msra.mxu0 %v264
    %287 = vmatprep.subr.mxu0 0.0
    %288 = vmatpush1.msra.mxu0 %v265
    %289 = vmatprep.subr.mxu0 0.0
    %290 = vmatpush1.msra.mxu0 %v266
    %291 = vmatprep.subr.mxu0 0.0
    %292 = vmatpush1.msra.mxu0 %v267
    %293 = vmatprep.subr.mxu0 0.0
    %294 = vmatpush1.msra.mxu0 %v268
    %295 = vmatprep.subr.mxu0 0.0
    %296 = vmatpush1.msra.mxu0 %v269
    %297 = vmatprep.subr.mxu0 0.0
    %298 = vmatpush1.msra.mxu0 %v270
    %299 = vmatprep.subr.mxu0 0.0
    %300 = vmatpush1.msra.mxu0 %v271
    %301 = vmatprep.subr.mxu0 0.0
    %302 = vmatpush1.msra.mxu0 %v272
    %303 = vmatprep.subr.mxu0 0.0
    %304 = vmatpush1.msra.mxu0 %v273
    %305 = vmatprep.subr.mxu0 0.0
    %306 = vmatpush1.msra.mxu0 %v274
    %307 = vmatprep.subr.mxu0 0.0
    %308 = vmatpush1.msra.mxu0 %v275
    %309 = vmatprep.subr.mxu0 0.0
    %310 = vmatpush1.msra.mxu0 0.0
    %311 = vmatprep.subr.mxu0 0.0
    %312 = vmatpush1.msra.mxu0 0.0
    %313 = vmatprep.subr.mxu0 0.0
    %314 = vmatpush1.msra.mxu0 0.0
    %315 = vmatprep.subr.mxu0 0.0
    %316 = vmatpush1.msra.mxu0 0.0
    %317 = vmatprep.subr.mxu0 0.0
    %318 = vmatpush1.msra.mxu0 0.0
    %319 = vmatprep.subr.mxu0 0.0
    %320 = vmatpush1.msra.mxu0 0.0
    %321 = vmatprep.subr.mxu0 0.0
    %322 = vmatpush1.msra.mxu0 0.0
    %323 = vmatprep.subr.mxu0 0.0
    %324 = vmatpush1.msra.mxu0 0.0
    %325 = vmatprep.subr.mxu0 0.0
    %326 = vmatpush1.msra.mxu0 0.0
    %327 = vmatprep.subr.mxu0 0.0
    %328 = vmatpush1.msra.mxu0 0.0
    %329 = vmatprep.subr.mxu0 0.0
    %330 = vmatpush1.msra.mxu0 0.0
    %331 = vmatprep.subr.mxu0 0.0
    %332 = vmatpush1.msra.mxu0 0.0
    %333 = vmatprep.subr.mxu0 0.0
    %334 = vmatpush1.msra.mxu0 0.0
    %335 = vmatprep.subr.mxu0 0.0
    %336 = vmatpush1.msra.mxu0 0.0
    %337 = vmatprep.subr.mxu0 0.0
    %338 = vmatpush1.msra.mxu0 0.0
    %339 = vmatprep.subr.mxu0 0.0
    %340 = vmatpush1.msra.mxu0 0.0
    %341 = vmatprep.mubr.f32.mxu0 0.0
    %342 = vmatmul.mubr.f32.gmra.mrb[0].mxu0 %v259
    %v343 = vpop.f32.mrb[0].mxu0
    %v344 = vadd.f32 %v276, %v343
    %v345 = vpop.f32.mrb[0].mxu0
    %346 = vdwg.mxu0
    %v347 = vmax.f32 %v344, 0.0
    %v348 = vld [vmem:[#allocation5 + $0x240] sm:$0xff]
    %v349 = vld [vmem:[#allocation5 + $0x260] sm:$0xff]
    %v350 = vld [vmem:[#allocation5 + $0x280] sm:$0xff]
    %v351 = vld [vmem:[#allocation5 + $0x2a0] sm:$0xff]
    %v352 = vld [vmem:[#allocation5 + $0x2c0] sm:$0xff]
    %v353 = vld [vmem:[#allocation5 + $0x2e0] sm:$0xff]
    %v354 = vld [vmem:[#allocation5 + $0x300] sm:$0xff]
    %v355 = vld [vmem:[#allocation5 + $0x320] sm:$0xff]
    %v356 = vld [vmem:[#allocation5 + $0x340] sm:$0xff]
    %v357 = vld [vmem:[#allocation5 + $0x360] sm:$0xff]
    %v358 = vld [vmem:[#allocation5 + $0x380] sm:$0xff]
    %v359 = vld [vmem:[#allocation5 + $0x3a0] sm:$0xff]
    %v360 = vld [vmem:[#allocation5 + $0x3c0] sm:$0xff]
    %v361 = vld [vmem:[#allocation5 + $0x3e0] sm:$0xff]
    %v362 = vld [vmem:[#allocation5 + $0x400] sm:$0xff]
    %v363 = vld [vmem:[#allocation5 + $0x420] sm:$0xff]
    %v364 = vld [vmem:[#allocation5 + $0x440] ss:$0 sm:$0xff]
    %365 = vmatprep.subr.mxu0 0.0
    %366 = vmatpush1.msra.mxu0 %v348
    %367 = vmatprep.subr.mxu0 0.0
    %368 = vmatpush1.msra.mxu0 %v349
    %369 = vmatprep.subr.mxu0 0.0
    %370 = vmatpush1.msra.mxu0 %v350
    %371 = vmatprep.subr.mxu0 0.0
    %372 = vmatpush1.msra.mxu0 %v351
    %373 = vmatprep.subr.mxu0 0.0
    %374 = vmatpush1.msra.mxu0 %v352
    %375 = vmatprep.subr.mxu0 0.0
    %376 = vmatpush1.msra.mxu0 %v353
    %377 = vmatprep.subr.mxu0 0.0
    %378 = vmatpush1.msra.mxu0 %v354
    %379 = vmatprep.subr.mxu0 0.0
    %380 = vmatpush1.msra.mxu0 %v355
    %381 = vmatprep.subr.mxu0 0.0
    %382 = vmatpush1.msra.mxu0 %v356
    %383 = vmatprep.subr.mxu0 0.0
    %384 = vmatpush1.msra.mxu0 %v357
    %385 = vmatprep.subr.mxu0 0.0
    %386 = vmatpush1.msra.mxu0 %v358
    %387 = vmatprep.subr.mxu0 0.0
    %388 = vmatpush1.msra.mxu0 %v359
    %389 = vmatprep.subr.mxu0 0.0
    %390 = vmatpush1.msra.mxu0 %v360
    %391 = vmatprep.subr.mxu0 0.0
    %392 = vmatpush1.msra.mxu0 %v361
    %393 = vmatprep.subr.mxu0 0.0
    %394 = vmatpush1.msra.mxu0 %v362
    %395 = vmatprep.subr.mxu0 0.0
    %396 = vmatpush1.msra.mxu0 %v363
    %397 = vmatprep.subr.mxu0 0.0
    %398 = vmatpush1.msra.mxu0 0.0
    %399 = vmatprep.subr.mxu0 0.0
    %400 = vmatpush1.msra.mxu0 0.0
    %401 = vmatprep.subr.mxu0 0.0
    %402 = vmatpush1.msra.mxu0 0.0
    %403 = vmatprep.subr.mxu0 0.0
    %404 = vmatpush1.msra.mxu0 0.0
    %405 = vmatprep.subr.mxu0 0.0
    %406 = vmatpush1.msra.mxu0 0.0
    %407 = vmatprep.subr.mxu0 0.0
    %408 = vmatpush1.msra.mxu0 0.0
    %409 = vmatprep.subr.mxu0 0.0
    %410 = vmatpush1.msra.mxu0 0.0
    %411 = vmatprep.subr.mxu0 0.0
    %412 = vmatpush1.msra.mxu0 0.0
    %413 = vmatprep.subr.mxu0 0.0
    %414 = vmatpush1.msra.mxu0 0.0
    %415 = vmatprep.subr.mxu0 0.0
    %416 = vmatpush1.msra.mxu0 0.0
    %417 = vmatprep.subr.mxu0 0.0
    %418 = vmatpush1.msra.mxu0 0.0
    %419 = vmatprep.subr.mxu0 0.0
    %420 = vmatpush1.msra.mxu0 0.0
    %421 = vmatprep.subr.mxu0 0.0
    %422 = vmatpush1.msra.mxu0 0.0
    %423 = vmatprep.subr.mxu0 0.0
    %424 = vmatpush1.msra.mxu0 0.0
    %425 = vmatprep.subr.mxu0 0.0
    %426 = vmatpush1.msra.mxu0 0.0
    %427 = vmatprep.subr.mxu0 0.0
    %428 = vmatpush1.msra.mxu0 0.0
    %429 = vmatprep.mubr.f32.mxu0 0.0
    %430 = vmatmul.mubr.f32.gmra.mrb[0].mxu0 %v347
    %v431 = vpop.f32.mrb[0].mxu0
    %v432 = vadd.f32 %v364, %v431
    %v433 = vpop.f32.mrb[0].mxu0
    %434 = vdwg.mxu0
    %v435 = vmax.f32 %v432, 0.0
    %v436 = vld [vmem:[#allocation5 + $0x460] sm:$0xff]
    %v437 = vld [vmem:[#allocation5 + $0x468] sm:$0xff]
    %v438 = vld [vmem:[#allocation5 + $0x470] sm:$0xff]
    %v439 = vld [vmem:[#allocation5 + $0x478] sm:$0xff]
    %v440 = vld [vmem:[#allocation5 + $0x480] sm:$0xff]
    %v441 = vld [vmem:[#allocation5 + $0x488] sm:$0xff]
    %v442 = vld [vmem:[#allocation5 + $0x490] sm:$0xff]
    %v443 = vld [vmem:[#allocation5 + $0x498] sm:$0xff]
    %v444 = vld [vmem:[#allocation5 + $0x4a0] sm:$0xff]
    %v445 = vld [vmem:[#allocation5 + $0x4a8] sm:$0xff]
    %v446 = vld [vmem:[#allocation5 + $0x4b0] sm:$0xff]
    %v447 = vld [vmem:[#allocation5 + $0x4b8] sm:$0xff]
    %v448 = vld [vmem:[#allocation5 + $0x4c0] sm:$0xff]
    %v449 = vld [vmem:[#allocation5 + $0x4c8] sm:$0xff]
    %v450 = vld [vmem:[#allocation5 + $0x4d0] sm:$0xff]
    %v451 = vld [vmem:[#allocation5 + $0x4d8] sm:$0xff]
    %v452 = vld [vmem:[#allocation5 + $0x4e0] sm:$0xff]
    %v453 = vld [vmem:[#allocation5 + $0x4e8] sm:$0xff]
    %v454 = vld [vmem:[#allocation5 + $0x4f0] sm:$0xff]
    %v455 = vld [vmem:[#allocation5 + $0x4f8] sm:$0xff]
    %v456 = vld [vmem:[#allocation5 + $0x500] sm:$0xff]
    %v457 = vld [vmem:[#allocation5 + $0x508] sm:$0xff]
    %v458 = vld [vmem:[#allocation5 + $0x510] sm:$0xff]
    %v459 = vld [vmem:[#allocation5 + $0x518] sm:$0xff]
    %v460 = vld [vmem:[#allocation5 + $0x520] sm:$0xff]
    %v461 = vld [vmem:[#allocation5 + $0x528] sm:$0xff]
    %v462 = vld [vmem:[#allocation5 + $0x530] sm:$0xff]
    %v463 = vld [vmem:[#allocation5 + $0x538] sm:$0xff]
    %v464 = vld [vmem:[#allocation5 + $0x540] sm:$0xff]
    %v465 = vld [vmem:[#allocation5 + $0x548] sm:$0xff]
    %v466 = vld [vmem:[#allocation5 + $0x550] sm:$0xff]
    %v467 = vld [vmem:[#allocation5 + $0x558] sm:$0xff]
    %v468 = vld [vmem:[#allocation5 + $0x560] sm:$0xff]
    %v469 = vld [vmem:[#allocation5 + $0x568] sm:$0xff]
    %v470 = vld [vmem:[#allocation5 + $0x570] sm:$0xff]
    %v471 = vld [vmem:[#allocation5 + $0x578] sm:$0xff]
    %v472 = vld [vmem:[#allocation5 + $0x580] sm:$0xff]
    %v473 = vld [vmem:[#allocation5 + $0x588] sm:$0xff]
    %v474 = vld [vmem:[#allocation5 + $0x590] sm:$0xff]
    %v475 = vld [vmem:[#allocation5 + $0x598] sm:$0xff]
    %v476 = vld [vmem:[#allocation5 + $0x5a0] sm:$0xff]
    %v477 = vld [vmem:[#allocation5 + $0x5a8] sm:$0xff]
    %v478 = vld [vmem:[#allocation5 + $0x5b0] sm:$0xff]
    %v479 = vld [vmem:[#allocation5 + $0x5b8] sm:$0xff]
    %v480 = vld [vmem:[#allocation5 + $0x5c0] sm:$0xff]
    %v481 = vld [vmem:[#allocation5 + $0x5c8] sm:$0xff]
    %v482 = vld [vmem:[#allocation5 + $0x5d0] sm:$0xff]
    %v483 = vld [vmem:[#allocation5 + $0x5d8] sm:$0xff]
    %v484 = vld [vmem:[#allocation5 + $0x5e0] sm:$0xff]
    %v485 = vld [vmem:[#allocation5 + $0x5e8] sm:$0xff]
    %v486 = vld [vmem:[#allocation5 + $0x5f0] sm:$0xff]
    %v487 = vld [vmem:[#allocation5 + $0x5f8] sm:$0xff]
    %v488 = vld [vmem:[#allocation5 + $0x600] sm:$0xff]
    %v489 = vld [vmem:[#allocation5 + $0x608] sm:$0xff]
    %v490 = vld [vmem:[#allocation5 + $0x610] sm:$0xff]
    %v491 = vld [vmem:[#allocation5 + $0x618] sm:$0xff]
    %v492 = vld [vmem:[#allocation5 + $0x620] sm:$0xff]
    %v493 = vld [vmem:[#allocation5 + $0x628] sm:$0xff]
    %v494 = vld [vmem:[#allocation5 + $0x630] sm:$0xff]
    %v495 = vld [vmem:[#allocation5 + $0x638] sm:$0xff]
    %v496 = vld [vmem:[#allocation5 + $0x640] sm:$0xff]
    %v497 = vld [vmem:[#allocation5 + $0x648] sm:$0xff]
    %v498 = vld [vmem:[#allocation5 + $0x650] sm:$0xff]
    %v499 = vld [vmem:[#allocation5 + $0x658] sm:$0xff]
    %s500 = scalar_lea.vmem [#allocation5], 1632
    %v501 = vld [vmem:[%s500] ss:$8 sm:$0xf]
    %v503 = vlaneseq
    %v504 = vshrl.u32 %v503, 7
    %v505 = vsub.s32 0, %v504
    %v506 = vrot.slane %v501, %v505
    %v507 = vlaneseq
    %v508 = vshrl.u32 %v507, 7
    %v509 = vsub.s32 1, %v508
    %v510 = vrot.slane %v501, %v509
    %v511 = vlaneseq
    %v512 = vshrl.u32 %v511, 7
    %v513 = vsub.s32 2, %v512
    %v514 = vrot.slane %v501, %v513
    %v515 = vlaneseq
    %v516 = vshrl.u32 %v515, 7
    %v517 = vsub.s32 3, %v516
    %v518 = vrot.slane %v501, %v517
    %523 = vmatprep.subr.mxu0 %v437
    %524 = vmatpush1.msra.mxu0 %v436
    %525 = vmatprep.subr.mxu0 %v441
    %526 = vmatpush1.msra.mxu0 %v440
    %527 = vmatprep.subr.mxu0 %v445
    %528 = vmatpush1.msra.mxu0 %v444
    %529 = vmatprep.subr.mxu0 %v449
    %530 = vmatpush1.msra.mxu0 %v448
    %531 = vmatprep.subr.mxu0 %v453
    %532 = vmatpush1.msra.mxu0 %v452
    %533 = vmatprep.subr.mxu0 %v457
    %534 = vmatpush1.msra.mxu0 %v456
    %535 = vmatprep.subr.mxu0 %v461
    %536 = vmatpush1.msra.mxu0 %v460
    %537 = vmatprep.subr.mxu0 %v465
    %538 = vmatpush1.msra.mxu0 %v464
    %539 = vmatprep.subr.mxu0 %v469
    %540 = vmatpush1.msra.mxu0 %v468
    %541 = vmatprep.subr.mxu0 %v473
    %542 = vmatpush1.msra.mxu0 %v472
    %543 = vmatprep.subr.mxu0 %v477
    %544 = vmatpush1.msra.mxu0 %v476
    %545 = vmatprep.subr.mxu0 %v481
    %546 = vmatpush1.msra.mxu0 %v480
    %547 = vmatprep.subr.mxu0 %v485
    %548 = vmatpush1.msra.mxu0 %v484
    %549 = vmatprep.subr.mxu0 %v489
    %550 = vmatpush1.msra.mxu0 %v488
    %551 = vmatprep.subr.mxu0 %v493
    %552 = vmatpush1.msra.mxu0 %v492
    %553 = vmatprep.subr.mxu0 %v497
    %554 = vmatpush1.msra.mxu0 %v496
    %555 = vmatprep.subr.mxu0 0.0
    %556 = vmatpush1.msra.mxu0 0.0
    %557 = vmatprep.subr.mxu0 0.0
    %558 = vmatpush1.msra.mxu0 0.0
    %559 = vmatprep.subr.mxu0 0.0
    %560 = vmatpush1.msra.mxu0 0.0
    %561 = vmatprep.subr.mxu0 0.0
    %562 = vmatpush1.msra.mxu0 0.0
    %563 = vmatprep.subr.mxu0 0.0
    %564 = vmatpush1.msra.mxu0 0.0
    %565 = vmatprep.subr.mxu0 0.0
    %566 = vmatpush1.msra.mxu0 0.0
    %567 = vmatprep.subr.mxu0 0.0
    %568 = vmatpush1.msra.mxu0 0.0
    %569 = vmatprep.subr.mxu0 0.0
    %570 = vmatpush1.msra.mxu0 0.0
    %571 = vmatprep.subr.mxu0 0.0
    %572 = vmatpush1.msra.mxu0 0.0
    %573 = vmatprep.subr.mxu0 0.0
    %574 = vmatpush1.msra.mxu0 0.0
    %575 = vmatprep.subr.mxu0 0.0
    %576 = vmatpush1.msra.mxu0 0.0
    %577 = vmatprep.subr.mxu0 0.0
    %578 = vmatpush1.msra.mxu0 0.0
    %579 = vmatprep.subr.mxu0 0.0
    %580 = vmatpush1.msra.mxu0 0.0
    %581 = vmatprep.subr.mxu0 0.0
    %582 = vmatpush1.msra.mxu0 0.0
    %583 = vmatprep.subr.mxu0 0.0
    %584 = vmatpush1.msra.mxu0 0.0
    %585 = vmatprep.subr.mxu0 0.0
    %586 = vmatpush1.msra.mxu0 0.0
    %587 = vmatprep.mubr.f32.mxu0 0.0
    %588 = vmatmul.mubr.f32.gmra.mrb[0].mxu0 %v435
    %v589 = vpop.f32.mrb[0].mxu0
    %v590 = vadd.f32 %v506, %v589
    %v591 = vpop.f32.mrb[0].mxu0
    %v592 = vadd.f32 %v510, %v591
    %593 = vdwg.mxu0
    %594 = vmatprep.subr.mxu0 %v439
    %595 = vmatpush1.msra.mxu0 %v438
    %596 = vmatprep.subr.mxu0 %v443
    %597 = vmatpush1.msra.mxu0 %v442
    %598 = vmatprep.subr.mxu0 %v447
    %599 = vmatpush1.msra.mxu0 %v446
    %600 = vmatprep.subr.mxu0 %v451
    %601 = vmatpush1.msra.mxu0 %v450
    %602 = vmatprep.subr.mxu0 %v455
    %603 = vmatpush1.msra.mxu0 %v454
    %604 = vmatprep.subr.mxu0 %v459
    %605 = vmatpush1.msra.mxu0 %v458
    %606 = vmatprep.subr.mxu0 %v463
    %607 = vmatpush1.msra.mxu0 %v462
    %608 = vmatprep.subr.mxu0 %v467
    %609 = vmatpush1.msra.mxu0 %v466
    %610 = vmatprep.subr.mxu0 %v471
    %611 = vmatpush1.msra.mxu0 %v470
    %612 = vmatprep.subr.mxu0 %v475
    %613 = vmatpush1.msra.mxu0 %v474
    %614 = vmatprep.subr.mxu0 %v479
    %615 = vmatpush1.msra.mxu0 %v478
    %616 = vmatprep.subr.mxu0 %v483
    %617 = vmatpush1.msra.mxu0 %v482
    %618 = vmatprep.subr.mxu0 %v487
    %619 = vmatpush1.msra.mxu0 %v486
    %620 = vmatprep.subr.mxu0 %v491
    %621 = vmatpush1.msra.mxu0 %v490
    %622 = vmatprep.subr.mxu0 %v495
    %623 = vmatpush1.msra.mxu0 %v494
    %624 = vmatprep.subr.mxu0 %v499
    %625 = vmatpush1.msra.mxu0 %v498
    %626 = vmatprep.subr.mxu0 0.0
    %627 = vmatpush1.msra.mxu0 0.0
    %628 = vmatprep.subr.mxu0 0.0
    %629 = vmatpush1.msra.mxu0 0.0
    %630 = vmatprep.subr.mxu0 0.0
    %631 = vmatpush1.msra.mxu0 0.0
    %632 = vmatprep.subr.mxu0 0.0
    %633 = vmatpush1.msra.mxu0 0.0
    %634 = vmatprep.subr.mxu0 0.0
    %635 = vmatpush1.msra.mxu0 0.0
    %636 = vmatprep.subr.mxu0 0.0
    %637 = vmatpush1.msra.mxu0 0.0
    %638 = vmatprep.subr.mxu0 0.0
    %639 = vmatpush1.msra.mxu0 0.0
    %640 = vmatprep.subr.mxu0 0.0
    %641 = vmatpush1.msra.mxu0 0.0
    %642 = vmatprep.subr.mxu0 0.0
    %643 = vmatpush1.msra.mxu0 0.0
    %644 = vmatprep.subr.mxu0 0.0
    %645 = vmatpush1.msra.mxu0 0.0
    %646 = vmatprep.subr.mxu0 0.0
    %647 = vmatpush1.msra.mxu0 0.0
    %648 = vmatprep.subr.mxu0 0.0
    %649 = vmatpush1.msra.mxu0 0.0
    %650 = vmatprep.subr.mxu0 0.0
    %651 = vmatpush1.msra.mxu0 0.0
    %652 = vmatprep.subr.mxu0 0.0
    %653 = vmatpush1.msra.mxu0 0.0
    %654 = vmatprep.subr.mxu0 0.0
    %655 = vmatpush1.msra.mxu0 0.0
    %656 = vmatprep.subr.mxu0 0.0
    %657 = vmatpush1.msra.mxu0 0.0
    %658 = vmatprep.mubr.f32.mxu0 0.0
    %659 = vmatmul.mubr.f32.gmra.mrb[0].mxu0 %v435
    %v660 = vpop.f32.mrb[0].mxu0
    %v661 = vadd.f32 %v514, %v660
    %v662 = vpop.f32.mrb[0].mxu0
    %v663 = vadd.f32 %v518, %v662
    %664 = vdwg.mxu0
    %v665 = vld [vmem:[#allocation5 + $0x680] sm:$0xff]
    %v666 = vld [vmem:[#allocation5 + $0x6a0] sm:$0xff]
    %v667 = vld [vmem:[#allocation5 + $0x6c0] sm:$0xff]
    %v668 = vld [vmem:[#allocation5 + $0x6e0] sm:$0xff]
    %v669 = vld [vmem:[#allocation5 + $0x700] sm:$0xff]
    %v670 = vld [vmem:[#allocation5 + $0x720] sm:$0xff]
    %v671 = vld [vmem:[#allocation5 + $0x740] sm:$0xff]
    %v672 = vld [vmem:[#allocation5 + $0x760] sm:$0xff]
    %v673 = vld [vmem:[#allocation5 + $0x780] sm:$0xff]
    %v674 = vld [vmem:[#allocation5 + $0x7a0] sm:$0xff]
    %v675 = vld [vmem:[#allocation5 + $0x7c0] sm:$0xff]
    %v676 = vld [vmem:[#allocation5 + $0x7e0] sm:$0xff]
    %v677 = vld [vmem:[#allocation5 + $0x800] sm:$0xff]
    %v678 = vld [vmem:[#allocation5 + $0x820] sm:$0xff]
    %v679 = vld [vmem:[#allocation5 + $0x840] sm:$0xff]
    %v680 = vld [vmem:[#allocation5 + $0x860] sm:$0xff]
    %681 = vmatprep.subr.mxu0 0.0
    %682 = vmatpush1.msra.mxu0 %v665
    %683 = vmatprep.subr.mxu0 0.0
    %684 = vmatpush1.msra.mxu0 %v666
    %685 = vmatprep.subr.mxu0 0.0
    %686 = vmatpush1.msra.mxu0 %v667
    %687 = vmatprep.subr.mxu0 0.0
    %688 = vmatpush1.msra.mxu0 %v668
    %689 = vmatprep.subr.mxu0 0.0
    %690 = vmatpush1.msra.mxu0 %v669
    %691 = vmatprep.subr.mxu0 0.0
    %692 = vmatpush1.msra.mxu0 %v670
    %693 = vmatprep.subr.mxu0 0.0
    %694 = vmatpush1.msra.mxu0 %v671
    %695 = vmatprep.subr.mxu0 0.0
    %696 = vmatpush1.msra.mxu0 %v672
    %697 = vmatprep.subr.mxu0 0.0
    %698 = vmatpush1.msra.mxu0 %v673
    %699 = vmatprep.subr.mxu0 0.0
    %700 = vmatpush1.msra.mxu0 %v674
    %701 = vmatprep.subr.mxu0 0.0
    %702 = vmatpush1.msra.mxu0 %v675
    %703 = vmatprep.subr.mxu0 0.0
    %704 = vmatpush1.msra.mxu0 %v676
    %705 = vmatprep.subr.mxu0 0.0
    %706 = vmatpush1.msra.mxu0 %v677
    %707 = vmatprep.subr.mxu0 0.0
    %708 = vmatpush1.msra.mxu0 %v678
    %709 = vmatprep.subr.mxu0 0.0
    %710 = vmatpush1.msra.mxu0 %v679
    %711 = vmatprep.subr.mxu0 0.0
    %712 = vmatpush1.msra.mxu0 %v680
    %713 = vmatprep.subr.mxu0 0.0
    %714 = vmatpush1.msra.mxu0 0.0
    %715 = vmatprep.subr.mxu0 0.0
    %716 = vmatpush1.msra.mxu0 0.0
    %717 = vmatprep.subr.mxu0 0.0
    %718 = vmatpush1.msra.mxu0 0.0
    %719 = vmatprep.subr.mxu0 0.0
    %720 = vmatpush1.msra.mxu0 0.0
    %721 = vmatprep.subr.mxu0 0.0
    %722 = vmatpush1.msra.mxu0 0.0
    %723 = vmatprep.subr.mxu0 0.0
    %724 = vmatpush1.msra.mxu0 0.0
    %725 = vmatprep.subr.mxu0 0.0
    %726 = vmatpush1.msra.mxu0 0.0
    %727 = vmatprep.subr.mxu0 0.0
    %728 = vmatpush1.msra.mxu0 0.0
    %729 = vmatprep.subr.mxu0 0.0
    %730 = vmatpush1.msra.mxu0 0.0
    %731 = vmatprep.subr.mxu0 0.0
    %732 = vmatpush1.msra.mxu0 0.0
    %733 = vmatprep.subr.mxu0 0.0
    %734 = vmatpush1.msra.mxu0 0.0
    %735 = vmatprep.subr.mxu0 0.0
    %736 = vmatpush1.msra.mxu0 0.0
    %737 = vmatprep.subr.mxu0 0.0
    %738 = vmatpush1.msra.mxu0 0.0
    %739 = vmatprep.subr.mxu0 0.0
    %740 = vmatpush1.msra.mxu0 0.0
    %741 = vmatprep.subr.mxu0 0.0
    %742 = vmatpush1.msra.mxu0 0.0
    %743 = vmatprep.subr.mxu0 0.0
    %744 = vmatpush1.msra.mxu0 0.0
    %745 = vmatprep.mubr.f32.mxu0 0.0
    %746 = vmatmul.mubr.f32.gmra.mrb[0].mxu0 %v38
    %v747 = vpop.f32.mrb[0].mxu0
    %v748 = vadd.f32 %v590, %v747
    %v749 = vpop.f32.mrb[0].mxu0
    %750 = vdwg.mxu0
    %v751 = vmax.f32 %v748, 0.0
    %v752 = vld [vmem:[#allocation5 + $0x880] sm:$0xff]
    %v753 = vld [vmem:[#allocation5 + $0x8a0] sm:$0xff]
    %v754 = vld [vmem:[#allocation5 + $0x8c0] sm:$0xff]
    %v755 = vld [vmem:[#allocation5 + $0x8e0] sm:$0xff]
    %v756 = vld [vmem:[#allocation5 + $0x900] sm:$0xff]
    %v757 = vld [vmem:[#allocation5 + $0x920] sm:$0xff]
    %v758 = vld [vmem:[#allocation5 + $0x940] sm:$0xff]
    %v759 = vld [vmem:[#allocation5 + $0x960] sm:$0xff]
    %v760 = vld [vmem:[#allocation5 + $0x980] sm:$0xff]
    %v761 = vld [vmem:[#allocation5 + $0x9a0] sm:$0xff]
    %v762 = vld [vmem:[#allocation5 + $0x9c0] sm:$0xff]
    %v763 = vld [vmem:[#allocation5 + $0x9e0] sm:$0xff]
    %v764 = vld [vmem:[#allocation5 + $0xa00] sm:$0xff]
    %v765 = vld [vmem:[#allocation5 + $0xa20] sm:$0xff]
    %v766 = vld [vmem:[#allocation5 + $0xa40] sm:$0xff]
    %v767 = vld [vmem:[#allocation5 + $0xa60] sm:$0xff]
    %768 = vmatprep.subr.mxu0 0.0
    %769 = vmatpush1.msra.mxu0 %v752
    %770 = vmatprep.subr.mxu0 0.0
    %771 = vmatpush1.msra.mxu0 %v753
    %772 = vmatprep.subr.mxu0 0.0
    %773 = vmatpush1.msra.mxu0 %v754
    %774 = vmatprep.subr.mxu0 0.0
    %775 = vmatpush1.msra.mxu0 %v755
    %776 = vmatprep.subr.mxu0 0.0
    %777 = vmatpush1.msra.mxu0 %v756
    %778 = vmatprep.subr.mxu0 0.0
    %779 = vmatpush1.msra.mxu0 %v757
    %780 = vmatprep.subr.mxu0 0.0
    %781 = vmatpush1.msra.mxu0 %v758
    %782 = vmatprep.subr.mxu0 0.0
    %783 = vmatpush1.msra.mxu0 %v759
    %784 = vmatprep.subr.mxu0 0.0
    %785 = vmatpush1.msra.mxu0 %v760
    %786 = vmatprep.subr.mxu0 0.0
    %787 = vmatpush1.msra.mxu0 %v761
    %788 = vmatprep.subr.mxu0 0.0
    %789 = vmatpush1.msra.mxu0 %v762
    %790 = vmatprep.subr.mxu0 0.0
    %791 = vmatpush1.msra.mxu0 %v763
    %792 = vmatprep.subr.mxu0 0.0
    %793 = vmatpush1.msra.mxu0 %v764
    %794 = vmatprep.subr.mxu0 0.0
    %795 = vmatpush1.msra.mxu0 %v765
    %796 = vmatprep.subr.mxu0 0.0
    %797 = vmatpush1.msra.mxu0 %v766
    %798 = vmatprep.subr.mxu0 0.0
    %799 = vmatpush1.msra.mxu0 %v767
    %800 = vmatprep.subr.mxu0 0.0
    %801 = vmatpush1.msra.mxu0 0.0
    %802 = vmatprep.subr.mxu0 0.0
    %803 = vmatpush1.msra.mxu0 0.0
    %804 = vmatprep.subr.mxu0 0.0
    %805 = vmatpush1.msra.mxu0 0.0
    %806 = vmatprep.subr.mxu0 0.0
    %807 = vmatpush1.msra.mxu0 0.0
    %808 = vmatprep.subr.mxu0 0.0
    %809 = vmatpush1.msra.mxu0 0.0
    %810 = vmatprep.subr.mxu0 0.0
    %811 = vmatpush1.msra.mxu0 0.0
    %812 = vmatprep.subr.mxu0 0.0
    %813 = vmatpush1.msra.mxu0 0.0
    %814 = vmatprep.subr.mxu0 0.0
    %815 = vmatpush1.msra.mxu0 0.0
    %816 = vmatprep.subr.mxu0 0.0
    %817 = vmatpush1.msra.mxu0 0.0
    %818 = vmatprep.subr.mxu0 0.0
    %819 = vmatpush1.msra.mxu0 0.0
    %820 = vmatprep.subr.mxu0 0.0
    %821 = vmatpush1.msra.mxu0 0.0
    %822 = vmatprep.subr.mxu0 0.0
    %823 = vmatpush1.msra.mxu0 0.0
    %824 = vmatprep.subr.mxu0 0.0
    %825 = vmatpush1.msra.mxu0 0.0
    %826 = vmatprep.subr.mxu0 0.0
    %827 = vmatpush1.msra.mxu0 0.0
    %828 = vmatprep.subr.mxu0 0.0
    %829 = vmatpush1.msra.mxu0 0.0
    %830 = vmatprep.subr.mxu0 0.0
    %831 = vmatpush1.msra.mxu0 0.0
    %832 = vmatprep.mubr.f32.mxu0 0.0
    %833 = vmatmul.mubr.f32.gmra.mrb[0].mxu0 %v751
    %v834 = vpop.f32.mrb[0].mxu0
    %v835 = vadd.f32 %v592, %v834
    %v836 = vpop.f32.mrb[0].mxu0
    %837 = vdwg.mxu0
    %v838 = vmax.f32 %v835, 0.0
    %v839 = vld [vmem:[#allocation5 + $0xa80] sm:$0xff]
    %v840 = vld [vmem:[#allocation5 + $0xaa0] sm:$0xff]
    %v841 = vld [vmem:[#allocation5 + $0xac0] sm:$0xff]
    %v842 = vld [vmem:[#allocation5 + $0xae0] sm:$0xff]
    %v843 = vld [vmem:[#allocation5 + $0xb00] sm:$0xff]
    %v844 = vld [vmem:[#allocation5 + $0xb20] sm:$0xff]
    %v845 = vld [vmem:[#allocation5 + $0xb40] sm:$0xff]
    %v846 = vld [vmem:[#allocation5 + $0xb60] sm:$0xff]
    %v847 = vld [vmem:[#allocation5 + $0xb80] sm:$0xff]
    %v848 = vld [vmem:[#allocation5 + $0xba0] sm:$0xff]
    %v849 = vld [vmem:[#allocation5 + $0xbc0] sm:$0xff]
    %v850 = vld [vmem:[#allocation5 + $0xbe0] sm:$0xff]
    %v851 = vld [vmem:[#allocation5 + $0xc00] sm:$0xff]
    %v852 = vld [vmem:[#allocation5 + $0xc20] sm:$0xff]
    %v853 = vld [vmem:[#allocation5 + $0xc40] sm:$0xff]
    %v854 = vld [vmem:[#allocation5 + $0xc60] sm:$0xff]
    %855 = vmatprep.subr.mxu0 0.0
    %856 = vmatpush1.msra.mxu0 %v839
    %857 = vmatprep.subr.mxu0 0.0
    %858 = vmatpush1.msra.mxu0 %v840
    %859 = vmatprep.subr.mxu0 0.0
    %860 = vmatpush1.msra.mxu0 %v841
    %861 = vmatprep.subr.mxu0 0.0
    %862 = vmatpush1.msra.mxu0 %v842
    %863 = vmatprep.subr.mxu0 0.0
    %864 = vmatpush1.msra.mxu0 %v843
    %865 = vmatprep.subr.mxu0 0.0
    %866 = vmatpush1.msra.mxu0 %v844
    %867 = vmatprep.subr.mxu0 0.0
    %868 = vmatpush1.msra.mxu0 %v845
    %869 = vmatprep.subr.mxu0 0.0
    %870 = vmatpush1.msra.mxu0 %v846
    %871 = vmatprep.subr.mxu0 0.0
    %872 = vmatpush1.msra.mxu0 %v847
    %873 = vmatprep.subr.mxu0 0.0
    %874 = vmatpush1.msra.mxu0 %v848
    %875 = vmatprep.subr.mxu0 0.0
    %876 = vmatpush1.msra.mxu0 %v849
    %877 = vmatprep.subr.mxu0 0.0
    %878 = vmatpush1.msra.mxu0 %v850
    %879 = vmatprep.subr.mxu0 0.0
    %880 = vmatpush1.msra.mxu0 %v851
    %881 = vmatprep.subr.mxu0 0.0
    %882 = vmatpush1.msra.mxu0 %v852
    %883 = vmatprep.subr.mxu0 0.0
    %884 = vmatpush1.msra.mxu0 %v853
    %885 = vmatprep.subr.mxu0 0.0
    %886 = vmatpush1.msra.mxu0 %v854
    %887 = vmatprep.subr.mxu0 0.0
    %888 = vmatpush1.msra.mxu0 0.0
    %889 = vmatprep.subr.mxu0 0.0
    %890 = vmatpush1.msra.mxu0 0.0
    %891 = vmatprep.subr.mxu0 0.0
    %892 = vmatpush1.msra.mxu0 0.0
    %893 = vmatprep.subr.mxu0 0.0
    %894 = vmatpush1.msra.mxu0 0.0
    %895 = vmatprep.subr.mxu0 0.0
    %896 = vmatpush1.msra.mxu0 0.0
    %897 = vmatprep.subr.mxu0 0.0
    %898 = vmatpush1.msra.mxu0 0.0
    %899 = vmatprep.subr.mxu0 0.0
    %900 = vmatpush1.msra.mxu0 0.0
    %901 = vmatprep.subr.mxu0 0.0
    %902 = vmatpush1.msra.mxu0 0.0
    %903 = vmatprep.subr.mxu0 0.0
    %904 = vmatpush1.msra.mxu0 0.0
    %905 = vmatprep.subr.mxu0 0.0
    %906 = vmatpush1.msra.mxu0 0.0
    %907 = vmatprep.subr.mxu0 0.0
    %908 = vmatpush1.msra.mxu0 0.0
    %909 = vmatprep.subr.mxu0 0.0
    %910 = vmatpush1.msra.mxu0 0.0
    %911 = vmatprep.subr.mxu0 0.0
    %912 = vmatpush1.msra.mxu0 0.0
    %913 = vmatprep.subr.mxu0 0.0
    %914 = vmatpush1.msra.mxu0 0.0
    %915 = vmatprep.subr.mxu0 0.0
    %916 = vmatpush1.msra.mxu0 0.0
    %917 = vmatprep.subr.mxu0 0.0
    %918 = vmatpush1.msra.mxu0 0.0
    %919 = vmatprep.mubr.f32.mxu0 0.0
    %920 = vmatmul.mubr.f32.gmra.mrb[0].mxu0 %v838
    %v921 = vpop.f32.mrb[0].mxu0
    %v922 = vadd.f32 %v661, %v921
    %v923 = vpop.f32.mrb[0].mxu0
    %924 = vdwg.mxu0
    %v925 = vmax.f32 %v922, 0.0
    %v926 = vld [vmem:[#allocation5 + $0xc80] sm:$0xff]
    %v927 = vld [vmem:[#allocation5 + $0xca0] sm:$0xff]
    %v928 = vld [vmem:[#allocation5 + $0xcc0] sm:$0xff]
    %v929 = vld [vmem:[#allocation5 + $0xce0] sm:$0xff]
    %v930 = vld [vmem:[#allocation5 + $0xd00] sm:$0xff]
    %v931 = vld [vmem:[#allocation5 + $0xd20] sm:$0xff]
    %v932 = vld [vmem:[#allocation5 + $0xd40] sm:$0xff]
    %v933 = vld [vmem:[#allocation5 + $0xd60] sm:$0xff]
    %v934 = vld [vmem:[#allocation5 + $0xd80] sm:$0xff]
    %v935 = vld [vmem:[#allocation5 + $0xda0] sm:$0xff]
    %v936 = vld [vmem:[#allocation5 + $0xdc0] sm:$0xff]
    %v937 = vld [vmem:[#allocation5 + $0xde0] sm:$0xff]
    %v938 = vld [vmem:[#allocation5 + $0xe00] sm:$0xff]
    %v939 = vld [vmem:[#allocation5 + $0xe20] sm:$0xff]
    %v940 = vld [vmem:[#allocation5 + $0xe40] sm:$0xff]
    %v941 = vld [vmem:[#allocation5 + $0xe60] sm:$0xff]
    %942 = vmatprep.subr.mxu0 0.0
    %943 = vmatpush1.msra.mxu0 %v926
    %944 = vmatprep.subr.mxu0 0.0
    %945 = vmatpush1.msra.mxu0 %v927
    %946 = vmatprep.subr.mxu0 0.0
    %947 = vmatpush1.msra.mxu0 %v928
    %948 = vmatprep.subr.mxu0 0.0
    %949 = vmatpush1.msra.mxu0 %v929
    %950 = vmatprep.subr.mxu0 0.0
    %951 = vmatpush1.msra.mxu0 %v930
    %952 = vmatprep.subr.mxu0 0.0
    %953 = vmatpush1.msra.mxu0 %v931
    %954 = vmatprep.subr.mxu0 0.0
    %955 = vmatpush1.msra.mxu0 %v932
    %956 = vmatprep.subr.mxu0 0.0
    %957 = vmatpush1.msra.mxu0 %v933
    %958 = vmatprep.subr.mxu0 0.0
    %959 = vmatpush1.msra.mxu0 %v934
    %960 = vmatprep.subr.mxu0 0.0
    %961 = vmatpush1.msra.mxu0 %v935
    %962 = vmatprep.subr.mxu0 0.0
    %963 = vmatpush1.msra.mxu0 %v936
    %964 = vmatprep.subr.mxu0 0.0
    %965 = vmatpush1.msra.mxu0 %v937
    %966 = vmatprep.subr.mxu0 0.0
    %967 = vmatpush1.msra.mxu0 %v938
    %968 = vmatprep.subr.mxu0 0.0
    %969 = vmatpush1.msra.mxu0 %v939
    %970 = vmatprep.subr.mxu0 0.0
    %971 = vmatpush1.msra.mxu0 %v940
    %972 = vmatprep.subr.mxu0 0.0
    %973 = vmatpush1.msra.mxu0 %v941
    %974 = vmatprep.subr.mxu0 0.0
    %975 = vmatpush1.msra.mxu0 0.0
    %976 = vmatprep.subr.mxu0 0.0
    %977 = vmatpush1.msra.mxu0 0.0
    %978 = vmatprep.subr.mxu0 0.0
    %979 = vmatpush1.msra.mxu0 0.0
    %980 = vmatprep.subr.mxu0 0.0
    %981 = vmatpush1.msra.mxu0 0.0
    %982 = vmatprep.subr.mxu0 0.0
    %983 = vmatpush1.msra.mxu0 0.0
    %984 = vmatprep.subr.mxu0 0.0
    %985 = vmatpush1.msra.mxu0 0.0
    %986 = vmatprep.subr.mxu0 0.0
    %987 = vmatpush1.msra.mxu0 0.0
    %988 = vmatprep.subr.mxu0 0.0
    %989 = vmatpush1.msra.mxu0 0.0
    %990 = vmatprep.subr.mxu0 0.0
    %991 = vmatpush1.msra.mxu0 0.0
    %992 = vmatprep.subr.mxu0 0.0
    %993 = vmatpush1.msra.mxu0 0.0
    %994 = vmatprep.subr.mxu0 0.0
    %995 = vmatpush1.msra.mxu0 0.0
    %996 = vmatprep.subr.mxu0 0.0
    %997 = vmatpush1.msra.mxu0 0.0
    %998 = vmatprep.subr.mxu0 0.0
    %999 = vmatpush1.msra.mxu0 0.0
    %1000 = vmatprep.subr.mxu0 0.0
    %1001 = vmatpush1.msra.mxu0 0.0
    %1002 = vmatprep.subr.mxu0 0.0
    %1003 = vmatpush1.msra.mxu0 0.0
    %1004 = vmatprep.subr.mxu0 0.0
    %1005 = vmatpush1.msra.mxu0 0.0
    %1006 = vmatprep.mubr.f32.mxu0 0.0
    %1007 = vmatmul.mubr.f32.gmra.mrb[0].mxu0 %v925
    %v1008 = vpop.f32.mrb[0].mxu0
    %v1009 = vadd.f32 %v663, %v1008
    %v1010 = vpop.f32.mrb[0].mxu0
    %1011 = vdwg.mxu0
    %1012 = vset.pattern.permute.xlu0 17
    %1013 = vperm.xlu0 %1012, %v38
    %v1014 = vpop.permute.xlu0 %1013
    %v1016 = vmul.f32 %v1009, %v1014
    %1017 = vst [vmem:[#allocation7] sm:$0xff] %v1016
    // Predicated region
    $region18: #{tpu_custom_call.1} parent=1 // pred_check
      _
    $region19: #{tpu_custom_call.1} parent=1 // pred_check_branch
      %1019 = sbr.rel (0) target = $region21
    $region20: #{tpu_custom_call.1} parent=1 // pred_region
      %s1021 = ssub.s32 128, 128
      %1022 = vsyncadd [#allocation4], %s1021
      %s1024 = sshll.u32 [#allocation7], 4
      %s1025 = int_to_ptr.vmem [resolvable:$true] %s1024
      %1027 = dma.vmem_to_hbm [thread:$0]  %s1025, 128, %s2, [#allocation4]
    $region21: #{tpu_custom_call.1} parent=1 // pred_fallthru
      _
    // Predicated region
    $region22: #{tpu_custom_call.1} parent=1 // pred_check
      _
    $region23: #{tpu_custom_call.1} parent=1 // pred_check_branch
      %1029 = sbr.rel (0) target = $region25
    $region24: #{tpu_custom_call.1} parent=1 // pred_region
      %1030 = dma.done [#allocation4], 128
    $region25: #{tpu_custom_call.1} parent=1 // pred_fallthru
      _
    %1031 = vsyncpa [#allocation3], 1
    %1032 = vsyncpa [#allocation6], 1
    %1033 = vsyncpa [#allocation4], 1

</llo_original>
